<compile_context>
chip_gen: v7x
topology: tpu7x:2x2x1
jax: 0.10.0
libtpu: 0.0.40
codegen_flags: <defaults>
</compile_context>

<pallas_src>
import functools

import jax
import jax.numpy as jnp
import numpy as np
from jax.experimental import pallas as pl
from jax.experimental.pallas import tpu as pltpu

EPS = 1e-5   # nn.InstanceNorm2d default eps (affine=False, biased variance)
PAD = 128    # lane-tile aligned zero pad on each side of the flat HW axis


# ----------------------------- Pallas kernel --------------------------------

def _residual_block_kernel(x_ref, w1_ref, b1_ref, w2_ref, b2_ref, o_ref,
                           pad_ref, *, H, W):
    """Fused Conv3x3+IN+ReLU -> Conv3x3+IN -> residual, whole batch.

    x_ref  : (N*C, HW)            input activations (row = n*C + c)
    w*_ref : (N*C, 9*N*C)         batch-block-diagonal conv weights
    b*_ref : (N*C, 1)             per-row bias
    o_ref  : (N*C, HW)            output
    pad_ref: (N*C, HW + 2*PAD)    VMEM scratch, lane-aligned zero pad
    """
    NC, HW = o_ref.shape

    # Zero the two pad strips exactly once; the centre [PAD, PAD+HW) is
    # always fully overwritten before it is read, so no full memset needed.
    pad_ref[:, pl.ds(0, PAD)] = jnp.zeros((NC, PAD), jnp.float32)
    pad_ref[:, pl.ds(PAD + HW, PAD)] = jnp.zeros((NC, PAD), jnp.float32)

    # Column-validity masks (computed once, (1, HW), broadcast in the select).
    # Horizontal taps that cross a row boundary would read a neighbouring
    # row's edge pixel; masking those columns reproduces the zero-padded
    # 'same' convolution.  Vertical out-of-range taps read real zeros from
    # the 128-lane pad (|dy*W + dx| <= W+1 << PAD).
    col = jax.lax.broadcasted_iota(jnp.int32, (1, HW), 1) % W
    ok_l = col >= 1            # tap dx = -1 reads column j-1
    ok_r = col <= (W - 2)      # tap dx = +1 reads column j+1

    def conv3x3(w_big, bias):
        """One fused MXU contraction over the 9 stacked shifted taps."""
        taps = []
        for dy in (-1, 0, 1):
            for dx in (-1, 0, 1):
                v = pad_ref[:, pl.ds(PAD + dy * W + dx, HW)]   # (NC, HW)
                if dx == -1:
                    v = jnp.where(ok_l, v, 0.0)
                elif dx == 1:
                    v = jnp.where(ok_r, v, 0.0)
                taps.append(v)
        slab = jnp.concatenate(taps, axis=0)                   # (9*NC, HW)
        out = jnp.dot(w_big, slab, preferred_element_type=jnp.float32)
        return out + bias                                      # (NC, HW)

    def instance_norm(y):
        # One-pass stats in f32: E[x], E[x^2]; biased variance clamped at 0.
        inv_hw = 1.0 / HW
        mean = jnp.sum(y, axis=1, keepdims=True) * inv_hw
        ex2 = jnp.sum(y * y, axis=1, keepdims=True) * inv_hw
        var = jnp.maximum(ex2 - mean * mean, 0.0)
        return (y - mean) * jax.lax.rsqrt(var + EPS)

    x = x_ref[...].astype(jnp.float32)
    w1 = w1_ref[...]
    b1 = b1_ref[...]
    w2 = w2_ref[...]
    b2 = b2_ref[...]

    # ---- Conv1 + InstanceNorm + ReLU ---------------------------------------
    pad_ref[:, pl.ds(PAD, HW)] = x                 # lane-aligned centre store
    h = jnp.maximum(instance_norm(conv3x3(w1, b1)), 0.0)

    # ---- Conv2 + InstanceNorm + residual add -------------------------------
    pad_ref[:, pl.ds(PAD, HW)] = h                 # reuse the same scratch
    y2 = instance_norm(conv3x3(w2, b2))

    o_ref[...] = (x + y2).astype(o_ref.dtype)


# ------------------------------ JAX wrapper ----------------------------------

def _block_diag_weight(w, N):
    """(C_out, C_in, 3, 3) torch layout -> (N*C_out, 9*N*C_in).

    Column index is (ky*3+kx)*N*C + n*C + c_in so it matches the in-kernel
    tap-slab stacking order (taps outer, batch/channel rows inner).
    """
    big6 = jnp.einsum("nm,oiyx->noyxmi",
                      jnp.eye(N, dtype=jnp.float32), w.astype(jnp.float32))
    N_, C = big6.shape[0], big6.shape[1]
    return big6.reshape(N_ * C, 9 * N_ * C)


@jax.jit
def residual_block_forward(x_nchw, w1, b1, w2, b2):
    """Pallas-backed ResidualBlock forward. Input/output: NCHW float32."""
    N, C, H, W = x_nchw.shape
    HW = H * W
    NC = N * C

    # Free reshape to a full-sublane, lane-dense (N*C, HW) slab.
    x_flat = x_nchw.reshape(NC, HW).astype(jnp.float32)

    w1b = _block_diag_weight(w1, N)                      # (NC, 9*NC)
    w2b = _block_diag_weight(w2, N)
    b1r = jnp.tile(b1.astype(jnp.float32), (N,)).reshape(NC, 1)
    b2r = jnp.tile(b2.astype(jnp.float32), (N,)).reshape(NC, 1)

    kernel = functools.partial(_residual_block_kernel, H=H, W=W)

    # TODO(synk): for production sizes add a >=2-way "parallel" grid axis
    # (HW or C_out tiles) so both v7x TensorCores are used, and set
    # vmem_limit_bytes / bf16 matmul operands per the scaling notes above.
    out_flat = pl.pallas_call(
        kernel,
        out_shape=jax.ShapeDtypeStruct((NC, HW), jnp.float32),
        grid=(1,),
        in_specs=[
            pl.BlockSpec((NC, HW), lambda i: (0, 0)),          # x
            pl.BlockSpec((NC, 9 * NC), lambda i: (0, 0)),      # w1 (block-diag)
            pl.BlockSpec((NC, 1), lambda i: (0, 0)),           # b1
            pl.BlockSpec((NC, 9 * NC), lambda i: (0, 0)),      # w2 (block-diag)
            pl.BlockSpec((NC, 1), lambda i: (0, 0)),           # b2
        ],
        out_specs=pl.BlockSpec((NC, HW), lambda i: (0, 0)),
        scratch_shapes=[pltpu.VMEM((NC, HW + 2 * PAD), jnp.float32)],
        compiler_params=pltpu.CompilerParams(
            dimension_semantics=("arbitrary",)),
    )(x_flat, w1b, b1r, w2b, b2r)

    return out_flat.reshape(N, C, H, W)


# ------------------------------ pure-JAX reference ---------------------------

def _reference(x_nchw, w1, b1, w2, b2):
    def conv(x, w, b):
        y = jax.lax.conv_general_dilated(
            x, w, window_strides=(1, 1), padding=((1, 1), (1, 1)),
            dimension_numbers=("NCHW", "OIHW", "NCHW"))
        return y + b[None, :, None, None]

    def inorm(x):
        m = jnp.mean(x, axis=(2, 3), keepdims=True)
        v = jnp.mean((x - m) ** 2, axis=(2, 3), keepdims=True)
        return (x - m) * jax.lax.rsqrt(v + EPS)

    h = jnp.maximum(inorm(conv(x_nchw, w1, b1)), 0.0)
    return x_nchw + inorm(conv(h, w2, b2))


# --------------------------------- main ---------------------------------------

if __name__ == "__main__":
    N, dim, H, W = 2, 4, 16, 16

    key = jax.random.PRNGKey(0)
    k1, k2, k3, k4, kx = jax.random.split(key, 5)
    # Deterministic synthetic parameters (shapes match nn.Conv2d(dim, dim, 3, 1, 1))
    w1 = jax.random.normal(k1, (dim, dim, 3, 3), jnp.float32) * 0.1
    b1 = jax.random.normal(k2, (dim,), jnp.float32) * 0.1
    w2 = jax.random.normal(k3, (dim, dim, 3, 3), jnp.float32) * 0.1
    b2 = jax.random.normal(k4, (dim,), jnp.float32) * 0.1
    x = jax.random.normal(kx, (N, dim, H, W), jnp.float32)

    out = jax.block_until_ready(residual_block_forward(x, w1, b1, w2, b2))
    ref = jax.block_until_ready(_reference(x, w1, b1, w2, b2))

    assert out.shape == (N, dim, H, W)
    np.testing.assert_allclose(np.asarray(out), np.asarray(ref),
                               rtol=1e-4, atol=1e-4)
    print("KERNEL_OK")
</pallas_src>

<mosaic_0001>
module attributes {stable_mosaic.version = 11 : i64} {
  func.func @_residual_block_kernel(%arg0: i32, %arg1: memref<8x256xf32, #tpu.memory_space<vmem>>, %arg2: memref<8x72xf32, #tpu.memory_space<vmem>>, %arg3: memref<8x1xf32, #tpu.memory_space<vmem>>, %arg4: memref<8x72xf32, #tpu.memory_space<vmem>>, %arg5: memref<8x1xf32, #tpu.memory_space<vmem>>, %arg6: memref<8x256xf32, #tpu.memory_space<vmem>>, %arg7: memref<8x512xf32, #tpu.memory_space<vmem>>) attributes {dimension_semantics = [#tpu.dimension_semantics<arbitrary>], iteration_bounds = array<i64: 1>, scalar_prefetch = 0 : i64, scratch_operands = 1 : i64, tpu.core_type = #tpu.core_type<tc>, window_params = [{pipeline_mode = #tpu.pipeline_mode<synchronous>, transform_indices = @transform_0, window_bounds = array<i64: 8, 256>}, {pipeline_mode = #tpu.pipeline_mode<synchronous>, transform_indices = @transform_1, window_bounds = array<i64: 8, 72>}, {pipeline_mode = #tpu.pipeline_mode<synchronous>, transform_indices = @transform_2, window_bounds = array<i64: 8, 1>}, {pipeline_mode = #tpu.pipeline_mode<synchronous>, transform_indices = @transform_3, window_bounds = array<i64: 8, 72>}, {pipeline_mode = #tpu.pipeline_mode<synchronous>, transform_indices = @transform_4, window_bounds = array<i64: 8, 1>}, {pipeline_mode = #tpu.pipeline_mode<synchronous>, transform_indices = @transform_5, window_bounds = array<i64: 8, 256>}]} {
    %cst = arith.constant 0.000000e+00 : f32
    %0 = vector.broadcast %cst : f32 to vector<8x128xf32>
    %c0 = arith.constant 0 : index
    %c0_0 = arith.constant 0 : index
    %1 = vector.load %arg7[%c0, %c0_0] : memref<8x512xf32, #tpu.memory_space<vmem>>, vector<8x128xf32>
    tpu.vector_store %arg7[%c0, %c0_0], %0 {strides = array<i32>} : memref<8x512xf32, #tpu.memory_space<vmem>>, vector<8x128xf32>,
    %cst_1 = arith.constant 0.000000e+00 : f32
    %2 = vector.broadcast %cst_1 : f32 to vector<8x128xf32>
    %c0_2 = arith.constant 0 : index
    %c384 = arith.constant 384 : index
    %3 = vector.load %arg7[%c0_2, %c384] : memref<8x512xf32, #tpu.memory_space<vmem>>, vector<8x128xf32>
    tpu.vector_store %arg7[%c0_2, %c384], %2 {strides = array<i32>} : memref<8x512xf32, #tpu.memory_space<vmem>>, vector<8x128xf32>,
    %4 = tpu.iota {dimensions = array<i32: 1>} : vector<1x256xi32>
    %c16_i32 = arith.constant 16 : i32
    %c0_i32 = arith.constant 0 : i32
    %5 = arith.cmpi eq, %c16_i32, %c0_i32 : i32
    %c1_i32 = arith.constant 1 : i32
    %6 = arith.select %5, %c1_i32, %c16_i32 : i32
    %7 = vector.broadcast %6 : i32 to vector<1x256xi32>
    %8 = arith.remsi %4, %7 : vector<1x256xi32>
    %c0_i32_3 = arith.constant 0 : i32
    %9 = vector.broadcast %c0_i32_3 : i32 to vector<1x256xi32>
    %10 = arith.cmpi ne, %8, %9 : vector<1x256xi32>
    %c0_i32_4 = arith.constant 0 : i32
    %11 = vector.broadcast %c0_i32_4 : i32 to vector<1x256xi32>
    %12 = arith.cmpi slt, %8, %11 : vector<1x256xi32>
    %c0_i32_5 = arith.constant 0 : i32
    %13 = arith.cmpi slt, %6, %c0_i32_5 : i32
    %14 = vector.broadcast %13 : i1 to vector<1x256xi1>
    %15 = vector.broadcast %14 : vector<1x256xi1> to vector<1x256xi1>
    %16 = arith.xori %12, %15 : vector<1x256xi1>
    %17 = arith.andi %16, %10 : vector<1x256xi1>
    %18 = vector.broadcast %6 : i32 to vector<1x256xi32>
    %19 = arith.addi %8, %18 : vector<1x256xi32>
    %20 = arith.select %17, %19, %8 : vector<1x256xi1>, vector<1x256xi32>
    %c1_i32_6 = arith.constant 1 : i32
    %21 = vector.broadcast %c1_i32_6 : i32 to vector<1x256xi32>
    %22 = arith.cmpi sge, %20, %21 : vector<1x256xi32>
    %c14_i32 = arith.constant 14 : i32
    %23 = vector.broadcast %c14_i32 : i32 to vector<1x256xi32>
    %24 = arith.cmpi sle, %20, %23 : vector<1x256xi32>
    %c0_7 = arith.constant 0 : index
    %c0_8 = arith.constant 0 : index
    %25 = vector.load %arg1[%c0_7, %c0_8] : memref<8x256xf32, #tpu.memory_space<vmem>>, vector<8x256xf32>
    %c0_9 = arith.constant 0 : index
    %c0_10 = arith.constant 0 : index
    %26 = vector.load %arg2[%c0_9, %c0_10] : memref<8x72xf32, #tpu.memory_space<vmem>>, vector<8x72xf32>
    %c0_11 = arith.constant 0 : index
    %c0_12 = arith.constant 0 : index
    %27 = vector.load %arg3[%c0_11, %c0_12] : memref<8x1xf32, #tpu.memory_space<vmem>>, vector<8x1xf32>
    %c0_13 = arith.constant 0 : index
    %c0_14 = arith.constant 0 : index
    %28 = vector.load %arg4[%c0_13, %c0_14] : memref<8x72xf32, #tpu.memory_space<vmem>>, vector<8x72xf32>
    %c0_15 = arith.constant 0 : index
    %c0_16 = arith.constant 0 : index
    %29 = vector.load %arg5[%c0_15, %c0_16] : memref<8x1xf32, #tpu.memory_space<vmem>>, vector<8x1xf32>
    %c0_17 = arith.constant 0 : index
    %c128 = arith.constant 128 : index
    %30 = vector.load %arg7[%c0_17, %c128] : memref<8x512xf32, #tpu.memory_space<vmem>>, vector<8x256xf32>
    tpu.vector_store %arg7[%c0_17, %c128], %25 {strides = array<i32>} : memref<8x512xf32, #tpu.memory_space<vmem>>, vector<8x256xf32>,
    %c0_18 = arith.constant 0 : index
    %c111 = arith.constant 111 : index
    %31 = vector.load %arg7[%c0_18, %c111] : memref<8x512xf32, #tpu.memory_space<vmem>>, vector<8x256xf32>
    %cst_19 = arith.constant 0.000000e+00 : f32
    %32 = vector.shape_cast %22 : vector<1x256xi1> to vector<1x256xi1>
    %33 = vector.broadcast %32 : vector<1x256xi1> to vector<8x256xi1>
    %34 = vector.broadcast %cst_19 : f32 to vector<8x256xf32>
    %35 = arith.select %33, %31, %34 : vector<8x256xi1>, vector<8x256xf32>
    %c0_20 = arith.constant 0 : index
    %c112 = arith.constant 112 : index
    %36 = vector.load %arg7[%c0_20, %c112] : memref<8x512xf32, #tpu.memory_space<vmem>>, vector<8x256xf32>
    %c0_21 = arith.constant 0 : index
    %c113 = arith.constant 113 : index
    %37 = vector.load %arg7[%c0_21, %c113] : memref<8x512xf32, #tpu.memory_space<vmem>>, vector<8x256xf32>
    %cst_22 = arith.constant 0.000000e+00 : f32
    %38 = vector.shape_cast %24 : vector<1x256xi1> to vector<1x256xi1>
    %39 = vector.broadcast %38 : vector<1x256xi1> to vector<8x256xi1>
    %40 = vector.broadcast %cst_22 : f32 to vector<8x256xf32>
    %41 = arith.select %39, %37, %40 : vector<8x256xi1>, vector<8x256xf32>
    %c0_23 = arith.constant 0 : index
    %c127 = arith.constant 127 : index
    %42 = vector.load %arg7[%c0_23, %c127] : memref<8x512xf32, #tpu.memory_space<vmem>>, vector<8x256xf32>
    %cst_24 = arith.constant 0.000000e+00 : f32
    %43 = vector.shape_cast %22 : vector<1x256xi1> to vector<1x256xi1>
    %44 = vector.broadcast %43 : vector<1x256xi1> to vector<8x256xi1>
    %45 = vector.broadcast %cst_24 : f32 to vector<8x256xf32>
    %46 = arith.select %44, %42, %45 : vector<8x256xi1>, vector<8x256xf32>
    %c0_25 = arith.constant 0 : index
    %c128_26 = arith.constant 128 : index
    %47 = vector.load %arg7[%c0_25, %c128_26] : memref<8x512xf32, #tpu.memory_space<vmem>>, vector<8x256xf32>
    %c0_27 = arith.constant 0 : index
    %c129 = arith.constant 129 : index
    %48 = vector.load %arg7[%c0_27, %c129] : memref<8x512xf32, #tpu.memory_space<vmem>>, vector<8x256xf32>
    %cst_28 = arith.constant 0.000000e+00 : f32
    %49 = vector.shape_cast %24 : vector<1x256xi1> to vector<1x256xi1>
    %50 = vector.broadcast %49 : vector<1x256xi1> to vector<8x256xi1>
    %51 = vector.broadcast %cst_28 : f32 to vector<8x256xf32>
    %52 = arith.select %50, %48, %51 : vector<8x256xi1>, vector<8x256xf32>
    %c0_29 = arith.constant 0 : index
    %c143 = arith.constant 143 : index
    %53 = vector.load %arg7[%c0_29, %c143] : memref<8x512xf32, #tpu.memory_space<vmem>>, vector<8x256xf32>
    %cst_30 = arith.constant 0.000000e+00 : f32
    %54 = vector.shape_cast %22 : vector<1x256xi1> to vector<1x256xi1>
    %55 = vector.broadcast %54 : vector<1x256xi1> to vector<8x256xi1>
    %56 = vector.broadcast %cst_30 : f32 to vector<8x256xf32>
    %57 = arith.select %55, %53, %56 : vector<8x256xi1>, vector<8x256xf32>
    %c0_31 = arith.constant 0 : index
    %c144 = arith.constant 144 : index
    %58 = vector.load %arg7[%c0_31, %c144] : memref<8x512xf32, #tpu.memory_space<vmem>>, vector<8x256xf32>
    %c0_32 = arith.constant 0 : index
    %c145 = arith.constant 145 : index
    %59 = vector.load %arg7[%c0_32, %c145] : memref<8x512xf32, #tpu.memory_space<vmem>>, vector<8x256xf32>
    %cst_33 = arith.constant 0.000000e+00 : f32
    %60 = vector.shape_cast %24 : vector<1x256xi1> to vector<1x256xi1>
    %61 = vector.broadcast %60 : vector<1x256xi1> to vector<8x256xi1>
    %62 = vector.broadcast %cst_33 : f32 to vector<8x256xf32>
    %63 = arith.select %61, %59, %62 : vector<8x256xi1>, vector<8x256xf32>
    %64 = tpu.concatenate %35, %36, %41, %46, %47, %52, %57, %58, %63 in 0 : vector<8x256xf32>, vector<8x256xf32>, vector<8x256xf32>, vector<8x256xf32>, vector<8x256xf32>, vector<8x256xf32>, vector<8x256xf32>, vector<8x256xf32>, vector<8x256xf32> -> vector<72x256xf32>
    %cst_34 = arith.constant dense<0.000000e+00> : vector<8x256xf32>
    %65 = tpu.matmul %26, %64, %cst_34 {dimension_numbers = #tpu.dot_dimension_numbers<[1], [0], [0], [1], [0, 0, 1, 1], [], []>} : vector<8x72xf32>, vector<72x256xf32>, vector<8x256xf32> -> vector<8x256xf32>
    %66 = vector.broadcast %27 : vector<8x1xf32> to vector<8x256xf32>
    %67 = arith.addf %65, %66 : vector<8x256xf32>
    %cst_35 = arith.constant dense<0.000000e+00> : vector<8xf32>
    %68 = vector.multi_reduction <add>, %67, %cst_35 [1] : vector<8x256xf32> to vector<8xf32>
    %69 = vector.shape_cast %68 : vector<8xf32> to vector<8x1xf32>
    %cst_36 = arith.constant 3.906250e-03 : f32
    %70 = vector.broadcast %cst_36 : f32 to vector<8x1xf32>
    %71 = arith.mulf %69, %70 : vector<8x1xf32>
    %72 = arith.mulf %67, %67 : vector<8x256xf32>
    %cst_37 = arith.constant dense<0.000000e+00> : vector<8xf32>
    %73 = vector.multi_reduction <add>, %72, %cst_37 [1] : vector<8x256xf32> to vector<8xf32>
    %74 = vector.shape_cast %73 : vector<8xf32> to vector<8x1xf32>
    %cst_38 = arith.constant 3.906250e-03 : f32
    %75 = vector.broadcast %cst_38 : f32 to vector<8x1xf32>
    %76 = arith.mulf %74, %75 : vector<8x1xf32>
    %77 = arith.mulf %71, %71 : vector<8x1xf32>
    %78 = arith.subf %76, %77 : vector<8x1xf32>
    %cst_39 = arith.constant 0.000000e+00 : f32
    %79 = vector.broadcast %cst_39 : f32 to vector<8x1xf32>
    %80 = arith.maximumf %78, %79 : vector<8x1xf32>
    %81 = vector.broadcast %71 : vector<8x1xf32> to vector<8x256xf32>
    %82 = arith.subf %67, %81 : vector<8x256xf32>
    %cst_40 = arith.constant 9.99999974E-6 : f32
    %83 = vector.broadcast %cst_40 : f32 to vector<8x1xf32>
    %84 = arith.addf %80, %83 : vector<8x1xf32>
    %85 = math.rsqrt %84 : vector<8x1xf32>
    %86 = vector.broadcast %85 : vector<8x1xf32> to vector<8x256xf32>
    %87 = arith.mulf %82, %86 : vector<8x256xf32>
    %cst_41 = arith.constant 0.000000e+00 : f32
    %88 = vector.broadcast %cst_41 : f32 to vector<8x256xf32>
    %89 = arith.maximumf %87, %88 : vector<8x256xf32>
    %c0_42 = arith.constant 0 : index
    %c128_43 = arith.constant 128 : index
    %90 = vector.load %arg7[%c0_42, %c128_43] : memref<8x512xf32, #tpu.memory_space<vmem>>, vector<8x256xf32>
    tpu.vector_store %arg7[%c0_42, %c128_43], %89 {strides = array<i32>} : memref<8x512xf32, #tpu.memory_space<vmem>>, vector<8x256xf32>,
    %c0_44 = arith.constant 0 : index
    %c111_45 = arith.constant 111 : index
    %91 = vector.load %arg7[%c0_44, %c111_45] : memref<8x512xf32, #tpu.memory_space<vmem>>, vector<8x256xf32>
    %cst_46 = arith.constant 0.000000e+00 : f32
    %92 = vector.shape_cast %22 : vector<1x256xi1> to vector<1x256xi1>
    %93 = vector.broadcast %92 : vector<1x256xi1> to vector<8x256xi1>
    %94 = vector.broadcast %cst_46 : f32 to vector<8x256xf32>
    %95 = arith.select %93, %91, %94 : vector<8x256xi1>, vector<8x256xf32>
    %c0_47 = arith.constant 0 : index
    %c112_48 = arith.constant 112 : index
    %96 = vector.load %arg7[%c0_47, %c112_48] : memref<8x512xf32, #tpu.memory_space<vmem>>, vector<8x256xf32>
    %c0_49 = arith.constant 0 : index
    %c113_50 = arith.constant 113 : index
    %97 = vector.load %arg7[%c0_49, %c113_50] : memref<8x512xf32, #tpu.memory_space<vmem>>, vector<8x256xf32>
    %cst_51 = arith.constant 0.000000e+00 : f32
    %98 = vector.shape_cast %24 : vector<1x256xi1> to vector<1x256xi1>
    %99 = vector.broadcast %98 : vector<1x256xi1> to vector<8x256xi1>
    %100 = vector.broadcast %cst_51 : f32 to vector<8x256xf32>
    %101 = arith.select %99, %97, %100 : vector<8x256xi1>, vector<8x256xf32>
    %c0_52 = arith.constant 0 : index
    %c127_53 = arith.constant 127 : index
    %102 = vector.load %arg7[%c0_52, %c127_53] : memref<8x512xf32, #tpu.memory_space<vmem>>, vector<8x256xf32>
    %cst_54 = arith.constant 0.000000e+00 : f32
    %103 = vector.shape_cast %22 : vector<1x256xi1> to vector<1x256xi1>
    %104 = vector.broadcast %103 : vector<1x256xi1> to vector<8x256xi1>
    %105 = vector.broadcast %cst_54 : f32 to vector<8x256xf32>
    %106 = arith.select %104, %102, %105 : vector<8x256xi1>, vector<8x256xf32>
    %c0_55 = arith.constant 0 : index
    %c128_56 = arith.constant 128 : index
    %107 = vector.load %arg7[%c0_55, %c128_56] : memref<8x512xf32, #tpu.memory_space<vmem>>, vector<8x256xf32>
    %c0_57 = arith.constant 0 : index
    %c129_58 = arith.constant 129 : index
    %108 = vector.load %arg7[%c0_57, %c129_58] : memref<8x512xf32, #tpu.memory_space<vmem>>, vector<8x256xf32>
    %cst_59 = arith.constant 0.000000e+00 : f32
    %109 = vector.shape_cast %24 : vector<1x256xi1> to vector<1x256xi1>
    %110 = vector.broadcast %109 : vector<1x256xi1> to vector<8x256xi1>
    %111 = vector.broadcast %cst_59 : f32 to vector<8x256xf32>
    %112 = arith.select %110, %108, %111 : vector<8x256xi1>, vector<8x256xf32>
    %c0_60 = arith.constant 0 : index
    %c143_61 = arith.constant 143 : index
    %113 = vector.load %arg7[%c0_60, %c143_61] : memref<8x512xf32, #tpu.memory_space<vmem>>, vector<8x256xf32>
    %cst_62 = arith.constant 0.000000e+00 : f32
    %114 = vector.shape_cast %22 : vector<1x256xi1> to vector<1x256xi1>
    %115 = vector.broadcast %114 : vector<1x256xi1> to vector<8x256xi1>
    %116 = vector.broadcast %cst_62 : f32 to vector<8x256xf32>
    %117 = arith.select %115, %113, %116 : vector<8x256xi1>, vector<8x256xf32>
    %c0_63 = arith.constant 0 : index
    %c144_64 = arith.constant 144 : index
    %118 = vector.load %arg7[%c0_63, %c144_64] : memref<8x512xf32, #tpu.memory_space<vmem>>, vector<8x256xf32>
    %c0_65 = arith.constant 0 : index
    %c145_66 = arith.constant 145 : index
    %119 = vector.load %arg7[%c0_65, %c145_66] : memref<8x512xf32, #tpu.memory_space<vmem>>, vector<8x256xf32>
    %cst_67 = arith.constant 0.000000e+00 : f32
    %120 = vector.shape_cast %24 : vector<1x256xi1> to vector<1x256xi1>
    %121 = vector.broadcast %120 : vector<1x256xi1> to vector<8x256xi1>
    %122 = vector.broadcast %cst_67 : f32 to vector<8x256xf32>
    %123 = arith.select %121, %119, %122 : vector<8x256xi1>, vector<8x256xf32>
    %124 = tpu.concatenate %95, %96, %101, %106, %107, %112, %117, %118, %123 in 0 : vector<8x256xf32>, vector<8x256xf32>, vector<8x256xf32>, vector<8x256xf32>, vector<8x256xf32>, vector<8x256xf32>, vector<8x256xf32>, vector<8x256xf32>, vector<8x256xf32> -> vector<72x256xf32>
    %cst_68 = arith.constant dense<0.000000e+00> : vector<8x256xf32>
    %125 = tpu.matmul %28, %124, %cst_68 {dimension_numbers = #tpu.dot_dimension_numbers<[1], [0], [0], [1], [0, 0, 1, 1], [], []>} : vector<8x72xf32>, vector<72x256xf32>, vector<8x256xf32> -> vector<8x256xf32>
    %126 = vector.broadcast %29 : vector<8x1xf32> to vector<8x256xf32>
    %127 = arith.addf %125, %126 : vector<8x256xf32>
    %cst_69 = arith.constant dense<0.000000e+00> : vector<8xf32>
    %128 = vector.multi_reduction <add>, %127, %cst_69 [1] : vector<8x256xf32> to vector<8xf32>
    %129 = vector.shape_cast %128 : vector<8xf32> to vector<8x1xf32>
    %cst_70 = arith.constant 3.906250e-03 : f32
    %130 = vector.broadcast %cst_70 : f32 to vector<8x1xf32>
    %131 = arith.mulf %129, %130 : vector<8x1xf32>
    %132 = arith.mulf %127, %127 : vector<8x256xf32>
    %cst_71 = arith.constant dense<0.000000e+00> : vector<8xf32>
    %133 = vector.multi_reduction <add>, %132, %cst_71 [1] : vector<8x256xf32> to vector<8xf32>
    %134 = vector.shape_cast %133 : vector<8xf32> to vector<8x1xf32>
    %cst_72 = arith.constant 3.906250e-03 : f32
    %135 = vector.broadcast %cst_72 : f32 to vector<8x1xf32>
    %136 = arith.mulf %134, %135 : vector<8x1xf32>
    %137 = arith.mulf %131, %131 : vector<8x1xf32>
    %138 = arith.subf %136, %137 : vector<8x1xf32>
    %cst_73 = arith.constant 0.000000e+00 : f32
    %139 = vector.broadcast %cst_73 : f32 to vector<8x1xf32>
    %140 = arith.maximumf %138, %139 : vector<8x1xf32>
    %141 = vector.broadcast %131 : vector<8x1xf32> to vector<8x256xf32>
    %142 = arith.subf %127, %141 : vector<8x256xf32>
    %cst_74 = arith.constant 9.99999974E-6 : f32
    %143 = vector.broadcast %cst_74 : f32 to vector<8x1xf32>
    %144 = arith.addf %140, %143 : vector<8x1xf32>
    %145 = math.rsqrt %144 : vector<8x1xf32>
    %146 = vector.broadcast %145 : vector<8x1xf32> to vector<8x256xf32>
    %147 = arith.mulf %142, %146 : vector<8x256xf32>
    %148 = arith.addf %25, %147 : vector<8x256xf32>
    %c0_75 = arith.constant 0 : index
    %c0_76 = arith.constant 0 : index
    %149 = vector.load %arg6[%c0_75, %c0_76] : memref<8x256xf32, #tpu.memory_space<vmem>>, vector<8x256xf32>
    tpu.vector_store %arg6[%c0_75, %c0_76], %148 {strides = array<i32>} : memref<8x256xf32, #tpu.memory_space<vmem>>, vector<8x256xf32>,
    return
  }
  func.func @transform_0(%arg0: i32) -> (i32, i32) {
    %c0_i32 = arith.constant 0 : i32
    %c0_i32_0 = arith.constant 0 : i32
    %c0_i32_1 = arith.constant 0 : i32
    return %c0_i32, %c0_i32_0 : i32, i32
  }
  func.func @transform_1(%arg0: i32) -> (i32, i32) {
    %c0_i32 = arith.constant 0 : i32
    %c0_i32_0 = arith.constant 0 : i32
    %c0_i32_1 = arith.constant 0 : i32
    return %c0_i32, %c0_i32_0 : i32, i32
  }
  func.func @transform_2(%arg0: i32) -> (i32, i32) {
    %c0_i32 = arith.constant 0 : i32
    %c0_i32_0 = arith.constant 0 : i32
    %c0_i32_1 = arith.constant 0 : i32
    return %c0_i32, %c0_i32_0 : i32, i32
  }
  func.func @transform_3(%arg0: i32) -> (i32, i32) {
    %c0_i32 = arith.constant 0 : i32
    %c0_i32_0 = arith.constant 0 : i32
    %c0_i32_1 = arith.constant 0 : i32
    return %c0_i32, %c0_i32_0 : i32, i32
  }
  func.func @transform_4(%arg0: i32) -> (i32, i32) {
    %c0_i32 = arith.constant 0 : i32
    %c0_i32_0 = arith.constant 0 : i32
    %c0_i32_1 = arith.constant 0 : i32
    return %c0_i32, %c0_i32_0 : i32, i32
  }
  func.func @transform_5(%arg0: i32) -> (i32, i32) {
    %c0_i32 = arith.constant 0 : i32
    %c0_i32_0 = arith.constant 0 : i32
    %c0_i32_1 = arith.constant 0 : i32
    return %c0_i32, %c0_i32_0 : i32, i32
  }
}

</mosaic_0001>

<llo_original>
// kernel: tile.13
$region0: #{tile.13}
  #allocation0 [shape = 's32[1]{0}', space=sflag, size = 0x4, scoped, tag = 'scoped memory for tile.13']
  %s0 = inlined_call_operand.vmem [shape: f32[4], index: 0, kind: input, shape index: {}]
  %s1 = inlined_call_operand.vmem [shape: f32[2,4], index: 1, kind: output, shape index: {}]
  // Predicated region
  $region2: #{tile.13} parent=0 // pred_check
    _
  $region3: #{tile.13} parent=0 // pred_check_branch
    %3 = sbr.rel (0) target = $region5
  $region4: #{tile.13} parent=0 // pred_region
    _
  $region5: #{tile.13} parent=0 // pred_fallthru
    _
  %v4 = vld [vmem:[%s0] ss:$0 sm:$0xff]
  %5 = vst [vmem:[%s1] sm:$0x3] %v4

// kernel: tile.0
$region0: #{tile.0}
  %s0 = inlined_call_operand.vmem [shape: f32[2,4], index: 0, kind: input, shape index: {}]
  %s1 = inlined_call_operand.vmem [shape: f32[8,1], index: 1, kind: output, shape index: {}]
  $region1: #{tile.0} parent=0
    #allocation0 [shape = 'u8[4096]{0}', space=vmem, size = 0x1000, scoped, tag = 'scoped mem for input reshape']
    %s3 = sshllo.u32 0, 2
    %v4 = vld [vmem:[%s0] sm:%s3]
    %5 = vst [vmem:[#allocation0] sm:%s3] %v4
    %v6 = vld [vmem:[#allocation0] sm:$0x3]
    %vm7 = vcmask 7168
    %8 = vst.msk [vmem:[%s1] ss:$4 sm:$0x3] %vm7, %v6
    %v9 = vld [vmem:[#allocation0] sm:$0x3]
    %10 = vrot.lane.b32.xlu0 %v9, 127
    %v11 = vpop.permute.xlu0 %10
    %vm12 = vcmask 7168
    %s13 = scalar_lea.vmem %s1, 1
    %14 = vst.msk [vmem:[%s13] ss:$4 sm:$0x3] %vm12, %v11
    %v15 = vld [vmem:[#allocation0] sm:$0x3]
    %16 = vrot.lane.b32.xlu0 %v15, 126
    %v17 = vpop.permute.xlu0 %16
    %vm18 = vcmask 7168
    %s19 = scalar_lea.vmem %s1, 2
    %20 = vst.msk [vmem:[%s19] ss:$4 sm:$0x3] %vm18, %v17
    %v21 = vld [vmem:[#allocation0] sm:$0x3]
    %22 = vrot.lane.b32.xlu0 %v21, 125
    %v23 = vpop.permute.xlu0 %22
    %vm24 = vcmask 7168
    %s25 = scalar_lea.vmem %s1, 3
    %26 = vst.msk [vmem:[%s25] ss:$4 sm:$0x3] %vm24, %v23

// kernel: residual_block_forward.1
$region0: #{residual_block_forward.1}
  #allocation0 [shape = 'u32[]', space=smem, size = 0x4, offset = 0x4, fixed_abs, tag = 'smem constant byte address 0x4 - core index']
  #allocation1 [shape = 'u32[144,128]{1,0:T(1,128)}', space=vmem, size = 0x12000, scoped, tag = 'internal scratch']
  #allocation2 [shape = 'f32[8,512]{1,0:T(8,128)}', space=vmem, size = 0x4000, scoped, tag = 'scratch operand']
  %s0 = inlined_call_operand.vmem [shape: f32[8,256], index: 0, kind: input, shape index: {}]
  %s1 = inlined_call_operand.vmem [shape: f32[8,72], index: 1, kind: input, shape index: {}]
  %s2 = inlined_call_operand.vmem [shape: f32[8,1], index: 2, kind: input, shape index: {}]
  %s3 = inlined_call_operand.vmem [shape: f32[8,72], index: 3, kind: input, shape index: {}]
  %s4 = inlined_call_operand.vmem [shape: f32[8,1], index: 4, kind: input, shape index: {}]
  %s5 = inlined_call_operand.vmem [shape: f32[8,256], index: 5, kind: output, shape index: {}]
  %s6 = sld [smem:[#allocation0]]
  $region30: #{residual_block_forward.1} parent=0
    _
  %s8 = ssub.s32 1, %s6
  %s9 = scalar_select 0, %s8, %s6
  // Predicated region
  $region2: #{residual_block_forward.1} parent=0 // pred_check
    _
  $region3: #{residual_block_forward.1} parent=0 // pred_check_branch
    %11 = sbr.rel (0) target = $region5
  $region4: #{residual_block_forward.1} parent=0 // pred_region
    _
  $region5: #{residual_block_forward.1} parent=0 // pred_fallthru
    _
  // Predicated region
  $region6: #{residual_block_forward.1} parent=0 // pred_check
    _
  $region7: #{residual_block_forward.1} parent=0 // pred_check_branch
    %13 = sbr.rel (0) target = $region9
  $region8: #{residual_block_forward.1} parent=0 // pred_region
    _
  $region9: #{residual_block_forward.1} parent=0 // pred_fallthru
    _
  // Predicated region
  $region10: #{residual_block_forward.1} parent=0 // pred_check
    _
  $region11: #{residual_block_forward.1} parent=0 // pred_check_branch
    %15 = sbr.rel (0) target = $region13
  $region12: #{residual_block_forward.1} parent=0 // pred_region
    _
  $region13: #{residual_block_forward.1} parent=0 // pred_fallthru
    _
  // Predicated region
  $region14: #{residual_block_forward.1} parent=0 // pred_check
    _
  $region15: #{residual_block_forward.1} parent=0 // pred_check_branch
    %17 = sbr.rel (0) target = $region17
  $region16: #{residual_block_forward.1} parent=0 // pred_region
    _
  $region17: #{residual_block_forward.1} parent=0 // pred_fallthru
    _
  // Predicated region
  $region18: #{residual_block_forward.1} parent=0 // pred_check
    _
  $region19: #{residual_block_forward.1} parent=0 // pred_check_branch
    %19 = sbr.rel (0) target = $region21
  $region20: #{residual_block_forward.1} parent=0 // pred_region
    _
  $region21: #{residual_block_forward.1} parent=0 // pred_fallthru
    _
  %20 = vst [vmem:[#allocation2] sm:$0xff] 0.0
  %21 = vst [vmem:[#allocation2 + $0x18] sm:$0xff] 0.0
  %v22 = vlaneseq
  %v23 = vand.u32 %v22, 127
  %v24 = vadd.s32 %v23, 128
  %vm25 = vcmp.lt.s32.totalorder %v23, 0
  %v26 = vsub.s32 0, %v23
  %v27 = vsel %vm25, %v26, %v23
  %v28 = vshrl.u32 %v27, 4
  %v29 = vand.u32 %v27, 15
  %v30 = vsub.s32 0, %v29
  %v31 = vsel %vm25, %v30, %v29
  %vm32 = vcmp.lt.s32.totalorder %v24, 0
  %v33 = vsub.s32 0, %v24
  %v34 = vsel %vm32, %v33, %v24
  %v35 = vshrl.u32 %v34, 4
  %v36 = vand.u32 %v34, 15
  %v37 = vsub.s32 0, %v36
  %v38 = vsel %vm32, %v37, %v36
  %vm39 = vcmp.ne.s32.totalorder %v31, 0
  %vm40 = vcmp.ne.s32.totalorder %v38, 0
  %vm41 = vcmp.lt.s32.totalorder %v31, 0
  %vm42 = vcmp.lt.s32.totalorder %v38, 0
  %vm43 = vmand %vm41, %vm39
  %vm44 = vmand %vm42, %vm40
  %v45 = vadd.s32 %v31, 16
  %v46 = vadd.s32 %v38, 16
  %v47 = vsel %vm43, %v45, %v31
  %v48 = vsel %vm44, %v46, %v38
  %vm49 = vcmp.ge.s32.totalorder %v47, 1
  %vm50 = vcmp.ge.s32.totalorder %v48, 1
  %vm51 = vcmp.le.s32.totalorder %v47, 14
  %vm52 = vcmp.le.s32.totalorder %v48, 14
  %v53 = vld [vmem:[%s0] sm:$0xff]
  %v54 = vld [vmem:[%s0 + $0x8] sm:$0xff]
  %v55 = vld [vmem:[%s1] sm:$0xff]
  %v56 = vld [vmem:[%s2] sm:$0xff]
  %v57 = vld [vmem:[%s3] sm:$0xff]
  %v58 = vld [vmem:[%s4] sm:$0xff]
  %59 = vst [vmem:[#allocation2 + $0x8] sm:$0xff] %v53
  %60 = vst [vmem:[#allocation2 + $0x10] sm:$0xff] %v54
  %v61 = vld [vmem:[#allocation2] sm:$0xff]
  %v62 = vld [vmem:[#allocation2 + $0x8] sm:$0xff]
  %v63 = vld [vmem:[#allocation2 + $0x10] sm:$0xff]
  %v64 = vsel %vm49, 1, 0
  %v65 = vsel %vm50, 1, 0
  %vm66 = vcmp.eq.s32.totalorder %v64, 1
  %vm67 = vcmp.eq.s32.totalorder %v65, 1
  %71 = vrot.lane.b32.xlu0 %v61, 17
  %v72 = vpop.permute.xlu0 %71
  %73 = vrot.lane.b32.xlu0 %v62, 17
  %v74 = vpop.permute.xlu0 %73
  %75 = vrot.lane.b32.xlu0 %v63, 17
  %v76 = vpop.permute.xlu0 %75
  %vm77 = vcmask 138240
  %v78 = vsel %vm77, %v72, %v74
  %v79 = vsel %vm77, %v74, %v76
  %v82 = vsel %vm66, %v78, 0.0
  %v83 = vsel %vm67, %v79, 0.0
  %v84 = vsel %vm51, 1, 0
  %v85 = vsel %vm52, 1, 0
  %vm86 = vcmp.eq.s32.totalorder %v84, 1
  %vm87 = vcmp.eq.s32.totalorder %v85, 1
  %88 = vrot.lane.b32.xlu0 %v61, 15
  %v89 = vpop.permute.xlu0 %88
  %90 = vrot.lane.b32.xlu0 %v62, 15
  %v91 = vpop.permute.xlu0 %90
  %92 = vrot.lane.b32.xlu0 %v63, 15
  %v93 = vpop.permute.xlu0 %92
  %vm94 = vcmask 121856
  %v95 = vsel %vm94, %v89, %v91
  %v96 = vsel %vm94, %v91, %v93
  %v99 = vsel %vm86, %v95, 0.0
  %v100 = vsel %vm87, %v96, 0.0
  %101 = vrot.lane.b32.xlu0 %v61, 1
  %v102 = vpop.permute.xlu0 %101
  %103 = vrot.lane.b32.xlu0 %v62, 1
  %v104 = vpop.permute.xlu0 %103
  %105 = vrot.lane.b32.xlu0 %v63, 1
  %v106 = vpop.permute.xlu0 %105
  %vm107 = vcmask 7168
  %v108 = vsel %vm107, %v102, %v104
  %v109 = vsel %vm107, %v104, %v106
  %v112 = vsel %vm66, %v108, 0.0
  %v113 = vsel %vm67, %v109, 0.0
  %v114 = vld [vmem:[#allocation2 + $0x8] sm:$0xff]
  %v115 = vld [vmem:[#allocation2 + $0x10] sm:$0xff]
  %v116 = vld [vmem:[#allocation2 + $0x18] sm:$0xff]
  %120 = vrot.lane.b32.xlu0 %v114, 127
  %v121 = vpop.permute.xlu0 %120
  %122 = vrot.lane.b32.xlu0 %v115, 127
  %v123 = vpop.permute.xlu0 %122
  %124 = vrot.lane.b32.xlu0 %v116, 127
  %v125 = vpop.permute.xlu0 %124
  %vm126 = vcmask 1039360
  %v127 = vsel %vm126, %v121, %v123
  %v128 = vsel %vm126, %v123, %v125
  %v131 = vsel %vm86, %v127, 0.0
  %v132 = vsel %vm87, %v128, 0.0
  %133 = vrot.lane.b32.xlu0 %v114, 113
  %v134 = vpop.permute.xlu0 %133
  %135 = vrot.lane.b32.xlu0 %v115, 113
  %v136 = vpop.permute.xlu0 %135
  %137 = vrot.lane.b32.xlu0 %v116, 113
  %v138 = vpop.permute.xlu0 %137
  %vm139 = vcmask 924672
  %v140 = vsel %vm139, %v134, %v136
  %v141 = vsel %vm139, %v136, %v138
  %v144 = vsel %vm66, %v140, 0.0
  %v145 = vsel %vm67, %v141, 0.0
  %146 = vrot.lane.b32.xlu0 %v114, 111
  %v147 = vpop.permute.xlu0 %146
  %148 = vrot.lane.b32.xlu0 %v115, 111
  %v149 = vpop.permute.xlu0 %148
  %150 = vrot.lane.b32.xlu0 %v116, 111
  %v151 = vpop.permute.xlu0 %150
  %vm152 = vcmask 908288
  %v153 = vsel %vm152, %v147, %v149
  %v154 = vsel %vm152, %v149, %v151
  %v157 = vsel %vm86, %v153, 0.0
  %v158 = vsel %vm87, %v154, 0.0
  %159 = vrot.lane.b32.xlu0 %v61, 16
  %v160 = vpop.permute.xlu0 %159
  %161 = vrot.lane.b32.xlu0 %v62, 16
  %v162 = vpop.permute.xlu0 %161
  %163 = vrot.lane.b32.xlu0 %v63, 16
  %v164 = vpop.permute.xlu0 %163
  %vm165 = vcmask 130048
  %v166 = vsel %vm165, %v160, %v162
  %v167 = vsel %vm165, %v162, %v164
  %170 = vrot.lane.b32.xlu0 %v114, 112
  %v171 = vpop.permute.xlu0 %170
  %172 = vrot.lane.b32.xlu0 %v115, 112
  %v173 = vpop.permute.xlu0 %172
  %174 = vrot.lane.b32.xlu0 %v116, 112
  %v175 = vpop.permute.xlu0 %174
  %vm176 = vcmask 916480
  %v177 = vsel %vm176, %v171, %v173
  %v178 = vsel %vm176, %v173, %v175
  %182 = vset.pattern.permute.xlu0 0
  %183 = vperm.xlu0 %182, %v56
  %v184 = vpop.permute.xlu0 %183
  %vm186 = vcmask 588800
  %v188 = vsel %vm186, %v55, 0
  %190 = vmatprep.subr.mxu0 %v83
  %191 = vmatpush1.msra.mxu0 %v82
  %192 = vmatprep.subr.mxu0 %v167
  %193 = vmatpush1.msra.mxu0 %v166
  %194 = vmatprep.subr.mxu0 %v100
  %195 = vmatpush1.msra.mxu0 %v99
  %196 = vmatprep.subr.mxu0 %v113
  %197 = vmatpush1.msra.mxu0 %v112
  %198 = vmatprep.subr.mxu0 %v63
  %199 = vmatpush1.msra.mxu0 %v62
  %200 = vmatprep.subr.mxu0 %v132
  %201 = vmatpush1.msra.mxu0 %v131
  %202 = vmatprep.subr.mxu0 %v145
  %203 = vmatpush1.msra.mxu0 %v144
  %204 = vmatprep.subr.mxu0 %v178
  %205 = vmatpush1.msra.mxu0 %v177
  %206 = vmatprep.subr.mxu0 %v158
  %207 = vmatpush1.msra.mxu0 %v157
  %208 = vmatprep.subr.mxu0 0.0
  %209 = vmatpush1.msra.mxu0 0.0
  %210 = vmatprep.subr.mxu0 0.0
  %211 = vmatpush1.msra.mxu0 0.0
  %212 = vmatprep.subr.mxu0 0.0
  %213 = vmatpush1.msra.mxu0 0.0
  %214 = vmatprep.subr.mxu0 0.0
  %215 = vmatpush1.msra.mxu0 0.0
  %216 = vmatprep.subr.mxu0 0.0
  %217 = vmatpush1.msra.mxu0 0.0
  %218 = vmatprep.subr.mxu0 0.0
  %219 = vmatpush1.msra.mxu0 0.0
  %220 = vmatprep.subr.mxu0 0.0
  %221 = vmatpush1.msra.mxu0 0.0
  %222 = vmatprep.subr.mxu0 0.0
  %223 = vmatpush1.msra.mxu0 0.0
  %224 = vmatprep.subr.mxu0 0.0
  %225 = vmatpush1.msra.mxu0 0.0
  %226 = vmatprep.subr.mxu0 0.0
  %227 = vmatpush1.msra.mxu0 0.0
  %228 = vmatprep.subr.mxu0 0.0
  %229 = vmatpush1.msra.mxu0 0.0
  %230 = vmatprep.subr.mxu0 0.0
  %231 = vmatpush1.msra.mxu0 0.0
  %232 = vmatprep.subr.mxu0 0.0
  %233 = vmatpush1.msra.mxu0 0.0
  %234 = vmatprep.subr.mxu0 0.0
  %235 = vmatpush1.msra.mxu0 0.0
  %236 = vmatprep.subr.mxu0 0.0
  %237 = vmatpush1.msra.mxu0 0.0
  %238 = vmatprep.subr.mxu0 0.0
  %239 = vmatpush1.msra.mxu0 0.0
  %240 = vmatprep.subr.mxu0 0.0
  %241 = vmatpush1.msra.mxu0 0.0
  %242 = vmatprep.subr.mxu0 0.0
  %243 = vmatpush1.msra.mxu0 0.0
  %244 = vmatprep.subr.mxu0 0.0
  %245 = vmatpush1.msra.mxu0 0.0
  %246 = vmatprep.subr.mxu0 0.0
  %247 = vmatpush1.msra.mxu0 0.0
  %248 = vmatprep.subr.mxu0 0.0
  %249 = vmatpush1.msra.mxu0 0.0
  %250 = vmatprep.subr.mxu0 0.0
  %251 = vmatpush1.msra.mxu0 0.0
  %252 = vmatprep.subr.mxu0 0.0
  %253 = vmatpush1.msra.mxu0 0.0
  %254 = vmatprep.mubr.f32.mxu0 0.0
  %255 = vmatmul.mubr.f32.gmra.mrb[0].mxu0 %v188
  %v256 = vpop.f32.mrb[0].mxu0
  %v257 = vadd.f32 %v184, %v256
  %v258 = vpop.f32.mrb[0].mxu0
  %v259 = vadd.f32 %v184, %v258
  %260 = vdwg.mxu0
  %v261 = vadd.f32 %v257, %v259
  %262 = vadd.xlane.f32.xlu0 %v261
  %v263 = vpop.xlane.xlu0 %262
  %v264 = vmul.f32 %v263, 0.00390625
  %v265 = vmul.f32 %v257, %v257
  %v266 = vmul.f32 %v259, %v259
  %v267 = vadd.f32 %v265, %v266
  %268 = vadd.xlane.f32.xlu0 %v267
  %v269 = vpop.xlane.xlu0 %268
  %v270 = vmul.f32 %v269, 0.00390625
  %v271 = vmul.f32 %v264, %v264
  %v272 = vsub.f32 %v270, %v271
  %v273 = vmax.f32 %v272, 0.0
  %v274 = vsub.f32 %v257, %v264
  %v275 = vsub.f32 %v259, %v264
  %v276 = vadd.f32 %v273, 1e-05
  %v277 = vrsqrt.pop %v276
  %v278 = vmul.f32 %v274, %v277
  %v279 = vmul.f32 %v275, %v277
  %v280 = vmax.f32 %v278, 0.0
  %v281 = vmax.f32 %v279, 0.0
  %282 = vst [vmem:[#allocation2 + $0x8] sm:$0xff] %v280
  %283 = vst [vmem:[#allocation2 + $0x10] sm:$0xff] %v281
  %v284 = vld [vmem:[#allocation2] sm:$0xff]
  %v285 = vld [vmem:[#allocation2 + $0x8] sm:$0xff]
  %v286 = vld [vmem:[#allocation2 + $0x10] sm:$0xff]
  %290 = vrot.lane.b32.xlu0 %v284, 17
  %v291 = vpop.permute.xlu0 %290
  %292 = vrot.lane.b32.xlu0 %v285, 17
  %v293 = vpop.permute.xlu0 %292
  %294 = vrot.lane.b32.xlu0 %v286, 17
  %v295 = vpop.permute.xlu0 %294
  %v296 = vsel %vm77, %v291, %v293
  %v297 = vsel %vm77, %v293, %v295
  %v300 = vsel %vm66, %v296, 0.0
  %v301 = vsel %vm67, %v297, 0.0
  %302 = vrot.lane.b32.xlu0 %v284, 15
  %v303 = vpop.permute.xlu0 %302
  %304 = vrot.lane.b32.xlu0 %v285, 15
  %v305 = vpop.permute.xlu0 %304
  %306 = vrot.lane.b32.xlu0 %v286, 15
  %v307 = vpop.permute.xlu0 %306
  %v308 = vsel %vm94, %v303, %v305
  %v309 = vsel %vm94, %v305, %v307
  %v312 = vsel %vm86, %v308, 0.0
  %v313 = vsel %vm87, %v309, 0.0
  %314 = vrot.lane.b32.xlu0 %v284, 1
  %v315 = vpop.permute.xlu0 %314
  %316 = vrot.lane.b32.xlu0 %v285, 1
  %v317 = vpop.permute.xlu0 %316
  %318 = vrot.lane.b32.xlu0 %v286, 1
  %v319 = vpop.permute.xlu0 %318
  %v320 = vsel %vm107, %v315, %v317
  %v321 = vsel %vm107, %v317, %v319
  %v324 = vsel %vm66, %v320, 0.0
  %v325 = vsel %vm67, %v321, 0.0
  %v326 = vld [vmem:[#allocation2 + $0x8] sm:$0xff]
  %v327 = vld [vmem:[#allocation2 + $0x10] sm:$0xff]
  %v328 = vld [vmem:[#allocation2 + $0x18] sm:$0xff]
  %332 = vrot.lane.b32.xlu0 %v326, 127
  %v333 = vpop.permute.xlu0 %332
  %334 = vrot.lane.b32.xlu0 %v327, 127
  %v335 = vpop.permute.xlu0 %334
  %336 = vrot.lane.b32.xlu0 %v328, 127
  %v337 = vpop.permute.xlu0 %336
  %v338 = vsel %vm126, %v333, %v335
  %v339 = vsel %vm126, %v335, %v337
  %v342 = vsel %vm86, %v338, 0.0
  %v343 = vsel %vm87, %v339, 0.0
  %344 = vrot.lane.b32.xlu0 %v326, 113
  %v345 = vpop.permute.xlu0 %344
  %346 = vrot.lane.b32.xlu0 %v327, 113
  %v347 = vpop.permute.xlu0 %346
  %348 = vrot.lane.b32.xlu0 %v328, 113
  %v349 = vpop.permute.xlu0 %348
  %v350 = vsel %vm139, %v345, %v347
  %v351 = vsel %vm139, %v347, %v349
  %v354 = vsel %vm66, %v350, 0.0
  %v355 = vsel %vm67, %v351, 0.0
  %356 = vrot.lane.b32.xlu0 %v326, 111
  %v357 = vpop.permute.xlu0 %356
  %358 = vrot.lane.b32.xlu0 %v327, 111
  %v359 = vpop.permute.xlu0 %358
  %360 = vrot.lane.b32.xlu0 %v328, 111
  %v361 = vpop.permute.xlu0 %360
  %v362 = vsel %vm152, %v357, %v359
  %v363 = vsel %vm152, %v359, %v361
  %v366 = vsel %vm86, %v362, 0.0
  %v367 = vsel %vm87, %v363, 0.0
  %368 = vrot.lane.b32.xlu0 %v284, 16
  %v369 = vpop.permute.xlu0 %368
  %370 = vrot.lane.b32.xlu0 %v285, 16
  %v371 = vpop.permute.xlu0 %370
  %372 = vrot.lane.b32.xlu0 %v286, 16
  %v373 = vpop.permute.xlu0 %372
  %v374 = vsel %vm165, %v369, %v371
  %v375 = vsel %vm165, %v371, %v373
  %378 = vrot.lane.b32.xlu0 %v326, 112
  %v379 = vpop.permute.xlu0 %378
  %380 = vrot.lane.b32.xlu0 %v327, 112
  %v381 = vpop.permute.xlu0 %380
  %382 = vrot.lane.b32.xlu0 %v328, 112
  %v383 = vpop.permute.xlu0 %382
  %v384 = vsel %vm176, %v379, %v381
  %v385 = vsel %vm176, %v381, %v383
  %389 = vset.pattern.permute.xlu0 0
  %390 = vperm.xlu0 %389, %v58
  %v391 = vpop.permute.xlu0 %390
  %v394 = vsel %vm186, %v57, 0
  %396 = vmatprep.subr.mxu0 %v301
  %397 = vmatpush1.msra.mxu0 %v300
  %398 = vmatprep.subr.mxu0 %v375
  %399 = vmatpush1.msra.mxu0 %v374
  %400 = vmatprep.subr.mxu0 %v313
  %401 = vmatpush1.msra.mxu0 %v312
  %402 = vmatprep.subr.mxu0 %v325
  %403 = vmatpush1.msra.mxu0 %v324
  %404 = vmatprep.subr.mxu0 %v286
  %405 = vmatpush1.msra.mxu0 %v285
  %406 = vmatprep.subr.mxu0 %v343
  %407 = vmatpush1.msra.mxu0 %v342
  %408 = vmatprep.subr.mxu0 %v355
  %409 = vmatpush1.msra.mxu0 %v354
  %410 = vmatprep.subr.mxu0 %v385
  %411 = vmatpush1.msra.mxu0 %v384
  %412 = vmatprep.subr.mxu0 %v367
  %413 = vmatpush1.msra.mxu0 %v366
  %414 = vmatprep.subr.mxu0 0.0
  %415 = vmatpush1.msra.mxu0 0.0
  %416 = vmatprep.subr.mxu0 0.0
  %417 = vmatpush1.msra.mxu0 0.0
  %418 = vmatprep.subr.mxu0 0.0
  %419 = vmatpush1.msra.mxu0 0.0
  %420 = vmatprep.subr.mxu0 0.0
  %421 = vmatpush1.msra.mxu0 0.0
  %422 = vmatprep.subr.mxu0 0.0
  %423 = vmatpush1.msra.mxu0 0.0
  %424 = vmatprep.subr.mxu0 0.0
  %425 = vmatpush1.msra.mxu0 0.0
  %426 = vmatprep.subr.mxu0 0.0
  %427 = vmatpush1.msra.mxu0 0.0
  %428 = vmatprep.subr.mxu0 0.0
  %429 = vmatpush1.msra.mxu0 0.0
  %430 = vmatprep.subr.mxu0 0.0
  %431 = vmatpush1.msra.mxu0 0.0
  %432 = vmatprep.subr.mxu0 0.0
  %433 = vmatpush1.msra.mxu0 0.0
  %434 = vmatprep.subr.mxu0 0.0
  %435 = vmatpush1.msra.mxu0 0.0
  %436 = vmatprep.subr.mxu0 0.0
  %437 = vmatpush1.msra.mxu0 0.0
  %438 = vmatprep.subr.mxu0 0.0
  %439 = vmatpush1.msra.mxu0 0.0
  %440 = vmatprep.subr.mxu0 0.0
  %441 = vmatpush1.msra.mxu0 0.0
  %442 = vmatprep.subr.mxu0 0.0
  %443 = vmatpush1.msra.mxu0 0.0
  %444 = vmatprep.subr.mxu0 0.0
  %445 = vmatpush1.msra.mxu0 0.0
  %446 = vmatprep.subr.mxu0 0.0
  %447 = vmatpush1.msra.mxu0 0.0
  %448 = vmatprep.subr.mxu0 0.0
  %449 = vmatpush1.msra.mxu0 0.0
  %450 = vmatprep.subr.mxu0 0.0
  %451 = vmatpush1.msra.mxu0 0.0
  %452 = vmatprep.subr.mxu0 0.0
  %453 = vmatpush1.msra.mxu0 0.0
  %454 = vmatprep.subr.mxu0 0.0
  %455 = vmatpush1.msra.mxu0 0.0
  %456 = vmatprep.subr.mxu0 0.0
  %457 = vmatpush1.msra.mxu0 0.0
  %458 = vmatprep.subr.mxu0 0.0
  %459 = vmatpush1.msra.mxu0 0.0
  %460 = vmatprep.mubr.f32.mxu0 0.0
  %461 = vmatmul.mubr.f32.gmra.mrb[0].mxu0 %v394
  %v462 = vpop.f32.mrb[0].mxu0
  %v463 = vadd.f32 %v391, %v462
  %v464 = vpop.f32.mrb[0].mxu0
  %v465 = vadd.f32 %v391, %v464
  %466 = vdwg.mxu0
  %v467 = vadd.f32 %v463, %v465
  %468 = vadd.xlane.f32.xlu0 %v467
  %v469 = vpop.xlane.xlu0 %468
  %v470 = vmul.f32 %v469, 0.00390625
  %v471 = vmul.f32 %v463, %v463
  %v472 = vmul.f32 %v465, %v465
  %v473 = vadd.f32 %v471, %v472
  %474 = vadd.xlane.f32.xlu0 %v473
  %v475 = vpop.xlane.xlu0 %474
  %v476 = vmul.f32 %v475, 0.00390625
  %v477 = vmul.f32 %v470, %v470
  %v478 = vsub.f32 %v476, %v477
  %v479 = vmax.f32 %v478, 0.0
  %v480 = vsub.f32 %v463, %v470
  %v481 = vsub.f32 %v465, %v470
  %v482 = vadd.f32 %v479, 1e-05
  %v483 = vrsqrt.pop %v482
  %v484 = vmul.f32 %v480, %v483
  %v485 = vmul.f32 %v481, %v483
  %v486 = vadd.f32 %v53, %v484
  %v487 = vadd.f32 %v54, %v485
  %488 = vst [vmem:[%s5] sm:$0xff] %v486
  %489 = vst [vmem:[%s5 + $0x8] sm:$0xff] %v487
  // Predicated region
  $region22: #{residual_block_forward.1} parent=0 // pred_check
    _
  $region23: #{residual_block_forward.1} parent=0 // pred_check_branch
    %491 = sbr.rel (0) target = $region25
  $region24: #{residual_block_forward.1} parent=0 // pred_region
    _
  $region25: #{residual_block_forward.1} parent=0 // pred_fallthru
    _
  // Predicated region
  $region26: #{residual_block_forward.1} parent=0 // pred_check
    _
  $region27: #{residual_block_forward.1} parent=0 // pred_check_branch
    %493 = sbr.rel (0) target = $region29
  $region28: #{residual_block_forward.1} parent=0 // pred_region
    _
  $region29: #{residual_block_forward.1} parent=0 // pred_fallthru
    _

</llo_original>
